<compile_context>
chip_gen: v6e
topology: v6e:2x2x1
jax: 0.10.0
libtpu: 0.0.40
codegen_flags: <defaults>
</compile_context>

<pallas_src>
import functools

import jax
import jax.numpy as jnp
from jax.experimental import pallas as pl
from jax.experimental.pallas import tpu as pltpu


def _decoder_kernel(rep_ref, tx_ref, w0r_ref, w0x_ref, b0_ref,
                    w1_ref, b1_ref, g_ref, be_ref, w2t_ref, b2_ref,
                    out_ref, *, isnorm, min_std, h_true):
    rep = rep_ref[...]                                   # (tn, d_rep)
    tx = tx_ref[...]                                     # (tn, x_dim)

    # --- layer 0: fused "concat" Linear + ReLU ---------------------------
    h = (jnp.dot(rep, w0r_ref[...], preferred_element_type=jnp.float32)
         + jnp.dot(tx, w0x_ref[...], preferred_element_type=jnp.float32)
         + b0_ref[...])
    h = jnp.maximum(h, 0.0)

    # --- layer 1: Linear + LayerNorm (if isnorm) + ReLU -------------------
    h = jnp.dot(h, w1_ref[...], preferred_element_type=jnp.float32) + b1_ref[...]
    if isnorm:
        # Hidden dim is zero-padded to 128; stats must use the true width.
        # sum(h) and sum(h*h) are unaffected by the zero padding.
        inv_h = 1.0 / h_true
        mu = jnp.sum(h, axis=-1, keepdims=True) * inv_h
        var = jnp.sum(h * h, axis=-1, keepdims=True) * inv_h - mu * mu
        h = (h - mu) * jax.lax.rsqrt(var + 1e-5) * g_ref[...] + be_ref[...]
    h = jnp.maximum(h, 0.0)

    # --- final layer, produced transposed: (2, tn), tokens on lanes -------
    # out_t[d, n] = sum_k w2t[d, k] * h[n, k]   (NT dot_general, MXU friendly)
    out_t = jnp.einsum("dh,nh->dn", w2t_ref[...], h,
                       preferred_element_type=jnp.float32) + b2_ref[...]

    # row 0 = mean, row 1 = sigma; one lane-dense unmasked store.
    sp = min_std + (1.0 - min_std) * jax.nn.softplus(out_t)
    row = jax.lax.broadcasted_iota(jnp.int32, out_t.shape, 0)
    out_ref[...] = jnp.where(row == 0, out_t, sp)


def _round_up(x, m):
    return ((x + m - 1) // m) * m


def decoder_forward(rep, t_x, params, *, isnorm=True, min_std=0.01, tile_n=1024):
    """Equivalent of Decoder.forward(rep, t_x) -> (mean, sigma).

    rep : [B, T, hidden_dim + latent_dim]   (deterministic path)
    t_x : [B, T, x_dim]
    """
    B, T, d_rep = rep.shape
    x_dim = t_x.shape[-1]
    N = B * T

    w0, b0, w1, b1, gamma, beta, w2, b2 = params
    H = w0.shape[1]
    Hp = _round_up(H, 128)
    pad_h = Hp - H

    # Host-side param prep: split w0 (concat never materialized) and zero-pad
    # the hidden dim to a full 128-lane multiple.  Padded gamma/beta/weight
    # columns are zero, so padded hidden channels are exactly zero throughout.
    w0_rep = jnp.pad(w0[:d_rep, :].astype(jnp.float32), ((0, 0), (0, pad_h)))
    w0_x = jnp.pad(w0[d_rep:, :].astype(jnp.float32), ((0, 0), (0, pad_h)))
    b0_p = jnp.pad(b0.astype(jnp.float32), ((0, 0), (0, pad_h)))
    w1_p = jnp.pad(w1.astype(jnp.float32), ((0, pad_h), (0, pad_h)))
    b1_p = jnp.pad(b1.astype(jnp.float32), ((0, 0), (0, pad_h)))
    g_p = jnp.pad(gamma.astype(jnp.float32), ((0, 0), (0, pad_h)))
    be_p = jnp.pad(beta.astype(jnp.float32), ((0, 0), (0, pad_h)))
    w2t_p = jnp.pad(w2.astype(jnp.float32), ((0, pad_h), (0, 0))).T   # (2, Hp)
    b2_t = b2.astype(jnp.float32).reshape(2, 1)                       # (2, 1)

    # Tile sizing: big lane-dense tiles; keep >=2 grid steps when N is large
    # enough (v7x has 2 TensorCores sharded over the parallel axis); tiny
    # problems use a single full-array tile (block == full array is legal).
    tile_n = max(128, _round_up(tile_n, 128))
    if N <= 256:
        tile_n_eff = _round_up(N, 8)
    else:
        tile_n_eff = min(tile_n, _round_up((N + 1) // 2, 128))
    N_pad = _round_up(N, tile_n_eff)
    grid = (N_pad // tile_n_eff,)

    rep2 = rep.reshape(N, d_rep).astype(jnp.float32)
    tx2 = t_x.reshape(N, x_dim).astype(jnp.float32)
    if N_pad != N:
        rep2 = jnp.pad(rep2, ((0, N_pad - N), (0, 0)))
        tx2 = jnp.pad(tx2, ((0, N_pad - N), (0, 0)))

    kernel = functools.partial(_decoder_kernel, isnorm=isnorm,
                               min_std=min_std, h_true=float(H))

    def wspec(shape):
        return pl.BlockSpec(shape, lambda i: (0,) * len(shape))

    out = pl.pallas_call(
        kernel,
        out_shape=jax.ShapeDtypeStruct((2, N_pad), jnp.float32),
        grid=grid,
        in_specs=[
            pl.BlockSpec((tile_n_eff, d_rep), lambda i: (i, 0)),   # rep tile
            pl.BlockSpec((tile_n_eff, x_dim), lambda i: (i, 0)),   # t_x tile
            wspec((d_rep, Hp)), wspec((x_dim, Hp)), wspec((1, Hp)),  # layer 0
            wspec((Hp, Hp)), wspec((1, Hp)),                         # layer 1
            wspec((1, Hp)), wspec((1, Hp)),                          # LN gamma/beta
            wspec((2, Hp)), wspec((2, 1)),                           # final layer
        ],
        out_specs=pl.BlockSpec((2, tile_n_eff), lambda i: (0, i)),
        compiler_params=pltpu.CompilerParams(
            dimension_semantics=("parallel",)),
    )(rep2, tx2, w0_rep, w0_x, b0_p, w1_p, b1_p, g_p, be_p, w2t_p, b2_t)

    mean = out[0, :N].reshape(B, T, 1)
    sigma = out[1, :N].reshape(B, T, 1)
    return mean, sigma


def init_params(key, d_in, n_out=2):
    """Deterministic init mimicking nn.Linear default (uniform +-1/sqrt(fan_in))."""
    H = d_in  # batch_MLP hidden == input == hidden_dim_2
    ks = jax.random.split(key, 6)

    def lin(kw, kb, fan_in, fan_out):
        bound = 1.0 / jnp.sqrt(fan_in)
        w = jax.random.uniform(kw, (fan_in, fan_out), jnp.float32, -bound, bound)
        b = jax.random.uniform(kb, (1, fan_out), jnp.float32, -bound, bound)
        return w, b

    w0, b0 = lin(ks[0], ks[1], d_in, H)
    w1, b1 = lin(ks[2], ks[3], H, H)
    w2, b2 = lin(ks[4], ks[5], H, n_out)
    gamma = jnp.ones((1, H), jnp.float32)
    beta = jnp.zeros((1, H), jnp.float32)
    return (w0, b0, w1, b1, gamma, beta, w2, b2)


def _reference(rep, t_x, params, *, isnorm=True, min_std=0.01):
    """Pure-JAX reference of the same forward pass (for correctness check)."""
    w0, b0, w1, b1, gamma, beta, w2, b2 = params
    x = jnp.concatenate([rep, t_x], axis=-1)
    h = jnp.maximum(jnp.dot(x, w0) + b0, 0.0)
    h = jnp.dot(h, w1) + b1
    if isnorm:
        mu = jnp.mean(h, axis=-1, keepdims=True)
        var = jnp.mean((h - mu) ** 2, axis=-1, keepdims=True)
        h = (h - mu) * jax.lax.rsqrt(var + 1e-5) * gamma + beta
    h = jnp.maximum(h, 0.0)
    out = jnp.dot(h, w2) + b2
    mean = out[..., :1]
    sigma = min_std + (1.0 - min_std) * jax.nn.softplus(out[..., 1:])
    return mean, sigma


if __name__ == "__main__":
    # Module defaults: hidden_dim=32, latent_dim=32; pick x_dim=4.
    x_dim, hidden_dim, latent_dim = 4, 32, 32
    B, T = 2, 8
    d_rep = hidden_dim + latent_dim          # deterministic path: rep = [r; z]
    d_in = d_rep + x_dim                     # hidden_dim_2 = 68

    key = jax.random.PRNGKey(0)
    k_rep, k_tx, k_par = jax.random.split(key, 3)
    rep = jax.random.normal(k_rep, (B, T, d_rep), jnp.float32)
    t_x = jax.random.normal(k_tx, (B, T, x_dim), jnp.float32)
    params = init_params(k_par, d_in)

    mean, sigma = decoder_forward(rep, t_x, params, isnorm=True, min_std=0.01)
    jax.block_until_ready((mean, sigma))

    ref_mean, ref_sigma = _reference(rep, t_x, params, isnorm=True, min_std=0.01)
    assert mean.shape == (B, T, 1) and sigma.shape == (B, T, 1)
    assert bool(jnp.all(jnp.isfinite(mean))) and bool(jnp.all(sigma >= 0.01))
    assert bool(jnp.allclose(mean, ref_mean, rtol=1e-3, atol=1e-3))
    assert bool(jnp.allclose(sigma, ref_sigma, rtol=1e-3, atol=1e-3))
    print("KERNEL_OK")
</pallas_src>

<mosaic_0001>
module attributes {stable_mosaic.version = 11 : i64} {
  func.func @_decoder_kernel(%arg0: i32, %arg1: memref<16x64xf32, #tpu.memory_space<vmem>>, %arg2: memref<16x4xf32, #tpu.memory_space<vmem>>, %arg3: memref<64x128xf32, #tpu.memory_space<vmem>>, %arg4: memref<4x128xf32, #tpu.memory_space<vmem>>, %arg5: memref<1x128xf32, #tpu.memory_space<vmem>>, %arg6: memref<128x128xf32, #tpu.memory_space<vmem>>, %arg7: memref<1x128xf32, #tpu.memory_space<vmem>>, %arg8: memref<1x128xf32, #tpu.memory_space<vmem>>, %arg9: memref<1x128xf32, #tpu.memory_space<vmem>>, %arg10: memref<2x128xf32, #tpu.memory_space<vmem>>, %arg11: memref<2x1xf32, #tpu.memory_space<vmem>>, %arg12: memref<2x16xf32, #tpu.memory_space<vmem>>) attributes {dimension_semantics = [#tpu.dimension_semantics<parallel>], iteration_bounds = array<i64: 1>, scalar_prefetch = 0 : i64, scratch_operands = 0 : i64, tpu.core_type = #tpu.core_type<tc>, window_params = [{transform_indices = @transform_0, window_bounds = array<i64: 16, 64>}, {transform_indices = @transform_1, window_bounds = array<i64: 16, 4>}, {pipeline_mode = #tpu.pipeline_mode<synchronous>, transform_indices = @transform_2, window_bounds = array<i64: 64, 128>}, {pipeline_mode = #tpu.pipeline_mode<synchronous>, transform_indices = @transform_3, window_bounds = array<i64: 4, 128>}, {pipeline_mode = #tpu.pipeline_mode<synchronous>, transform_indices = @transform_4, window_bounds = array<i64: 1, 128>}, {pipeline_mode = #tpu.pipeline_mode<synchronous>, transform_indices = @transform_5, window_bounds = array<i64: 128, 128>}, {pipeline_mode = #tpu.pipeline_mode<synchronous>, transform_indices = @transform_6, window_bounds = array<i64: 1, 128>}, {pipeline_mode = #tpu.pipeline_mode<synchronous>, transform_indices = @transform_7, window_bounds = array<i64: 1, 128>}, {pipeline_mode = #tpu.pipeline_mode<synchronous>, transform_indices = @transform_8, window_bounds = array<i64: 1, 128>}, {pipeline_mode = #tpu.pipeline_mode<synchronous>, transform_indices = @transform_9, window_bounds = array<i64: 2, 128>}, {pipeline_mode = #tpu.pipeline_mode<synchronous>, transform_indices = @transform_10, window_bounds = array<i64: 2, 1>}, {transform_indices = @transform_11, window_bounds = array<i64: 2, 16>}]} {
    %c0 = arith.constant 0 : index
    %c0_0 = arith.constant 0 : index
    %0 = vector.load %arg1[%c0, %c0_0] : memref<16x64xf32, #tpu.memory_space<vmem>>, vector<16x64xf32>
    %c0_1 = arith.constant 0 : index
    %c0_2 = arith.constant 0 : index
    %1 = vector.load %arg2[%c0_1, %c0_2] : memref<16x4xf32, #tpu.memory_space<vmem>>, vector<16x4xf32>
    %c0_3 = arith.constant 0 : index
    %c0_4 = arith.constant 0 : index
    %2 = vector.load %arg3[%c0_3, %c0_4] : memref<64x128xf32, #tpu.memory_space<vmem>>, vector<64x128xf32>
    %cst = arith.constant dense<0.000000e+00> : vector<16x128xf32>
    %3 = tpu.matmul %0, %2, %cst {dimension_numbers = #tpu.dot_dimension_numbers<[1], [0], [0], [1], [0, 0, 1, 1], [], []>} : vector<16x64xf32>, vector<64x128xf32>, vector<16x128xf32> -> vector<16x128xf32>
    %c0_5 = arith.constant 0 : index
    %c0_6 = arith.constant 0 : index
    %4 = vector.load %arg4[%c0_5, %c0_6] : memref<4x128xf32, #tpu.memory_space<vmem>>, vector<4x128xf32>
    %cst_7 = arith.constant dense<0.000000e+00> : vector<16x128xf32>
    %5 = tpu.matmul %1, %4, %cst_7 {dimension_numbers = #tpu.dot_dimension_numbers<[1], [0], [0], [1], [0, 0, 1, 1], [], []>} : vector<16x4xf32>, vector<4x128xf32>, vector<16x128xf32> -> vector<16x128xf32>
    %6 = arith.addf %3, %5 : vector<16x128xf32>
    %c0_8 = arith.constant 0 : index
    %c0_9 = arith.constant 0 : index
    %7 = vector.load %arg5[%c0_8, %c0_9] : memref<1x128xf32, #tpu.memory_space<vmem>>, vector<1x128xf32>
    %8 = vector.broadcast %7 : vector<1x128xf32> to vector<16x128xf32>
    %9 = arith.addf %6, %8 : vector<16x128xf32>
    %cst_10 = arith.constant 0.000000e+00 : f32
    %10 = vector.broadcast %cst_10 : f32 to vector<16x128xf32>
    %11 = arith.maximumf %9, %10 : vector<16x128xf32>
    %c0_11 = arith.constant 0 : index
    %c0_12 = arith.constant 0 : index
    %12 = vector.load %arg6[%c0_11, %c0_12] : memref<128x128xf32, #tpu.memory_space<vmem>>, vector<128x128xf32>
    %cst_13 = arith.constant dense<0.000000e+00> : vector<16x128xf32>
    %13 = tpu.matmul %11, %12, %cst_13 {dimension_numbers = #tpu.dot_dimension_numbers<[1], [0], [0], [1], [0, 0, 1, 1], [], []>} : vector<16x128xf32>, vector<128x128xf32>, vector<16x128xf32> -> vector<16x128xf32>
    %c0_14 = arith.constant 0 : index
    %c0_15 = arith.constant 0 : index
    %14 = vector.load %arg7[%c0_14, %c0_15] : memref<1x128xf32, #tpu.memory_space<vmem>>, vector<1x128xf32>
    %15 = vector.broadcast %14 : vector<1x128xf32> to vector<16x128xf32>
    %16 = arith.addf %13, %15 : vector<16x128xf32>
    %cst_16 = arith.constant dense<0.000000e+00> : vector<16xf32>
    %17 = vector.multi_reduction <add>, %16, %cst_16 [1] : vector<16x128xf32> to vector<16xf32>
    %18 = vector.shape_cast %17 : vector<16xf32> to vector<16x1xf32>
    %cst_17 = arith.constant 0.0147058824 : f32
    %19 = vector.broadcast %cst_17 : f32 to vector<16x1xf32>
    %20 = arith.mulf %18, %19 : vector<16x1xf32>
    %21 = arith.mulf %16, %16 : vector<16x128xf32>
    %cst_18 = arith.constant dense<0.000000e+00> : vector<16xf32>
    %22 = vector.multi_reduction <add>, %21, %cst_18 [1] : vector<16x128xf32> to vector<16xf32>
    %23 = vector.shape_cast %22 : vector<16xf32> to vector<16x1xf32>
    %cst_19 = arith.constant 0.0147058824 : f32
    %24 = vector.broadcast %cst_19 : f32 to vector<16x1xf32>
    %25 = arith.mulf %23, %24 : vector<16x1xf32>
    %26 = arith.mulf %20, %20 : vector<16x1xf32>
    %27 = arith.subf %25, %26 : vector<16x1xf32>
    %28 = vector.broadcast %20 : vector<16x1xf32> to vector<16x128xf32>
    %29 = arith.subf %16, %28 : vector<16x128xf32>
    %cst_20 = arith.constant 9.99999974E-6 : f32
    %30 = vector.broadcast %cst_20 : f32 to vector<16x1xf32>
    %31 = arith.addf %27, %30 : vector<16x1xf32>
    %32 = math.rsqrt %31 : vector<16x1xf32>
    %33 = vector.broadcast %32 : vector<16x1xf32> to vector<16x128xf32>
    %34 = arith.mulf %29, %33 : vector<16x128xf32>
    %c0_21 = arith.constant 0 : index
    %c0_22 = arith.constant 0 : index
    %35 = vector.load %arg8[%c0_21, %c0_22] : memref<1x128xf32, #tpu.memory_space<vmem>>, vector<1x128xf32>
    %36 = vector.broadcast %35 : vector<1x128xf32> to vector<16x128xf32>
    %37 = arith.mulf %34, %36 : vector<16x128xf32>
    %c0_23 = arith.constant 0 : index
    %c0_24 = arith.constant 0 : index
    %38 = vector.load %arg9[%c0_23, %c0_24] : memref<1x128xf32, #tpu.memory_space<vmem>>, vector<1x128xf32>
    %39 = vector.broadcast %38 : vector<1x128xf32> to vector<16x128xf32>
    %40 = arith.addf %37, %39 : vector<16x128xf32>
    %cst_25 = arith.constant 0.000000e+00 : f32
    %41 = vector.broadcast %cst_25 : f32 to vector<16x128xf32>
    %42 = arith.maximumf %40, %41 : vector<16x128xf32>
    %c0_26 = arith.constant 0 : index
    %c0_27 = arith.constant 0 : index
    %43 = vector.load %arg10[%c0_26, %c0_27] : memref<2x128xf32, #tpu.memory_space<vmem>>, vector<2x128xf32>
    "tpu.trace_start"() <{level = 10 : i32, message = "dh,nh->dn"}> : () -> ()
    %cst_28 = arith.constant dense<0.000000e+00> : vector<2x16xf32>
    %44 = tpu.matmul %43, %42, %cst_28 {dimension_numbers = #tpu.dot_dimension_numbers<[1], [1], [0], [0], [0, 0, 1, 0], [], []>} : vector<2x128xf32>, vector<16x128xf32>, vector<2x16xf32> -> vector<2x16xf32>
    "tpu.trace_stop"() : () -> ()
    %c0_29 = arith.constant 0 : index
    %c0_30 = arith.constant 0 : index
    %45 = vector.load %arg11[%c0_29, %c0_30] : memref<2x1xf32, #tpu.memory_space<vmem>>, vector<2x1xf32>
    %46 = vector.broadcast %45 : vector<2x1xf32> to vector<2x16xf32>
    %47 = arith.addf %44, %46 : vector<2x16xf32>
    %cst_31 = arith.constant 0.000000e+00 : f32
    %48 = vector.broadcast %cst_31 : f32 to vector<2x16xf32>
    %49 = arith.maximumf %47, %48 : vector<2x16xf32>
    %50 = vector.broadcast %cst_31 : f32 to vector<2x16xf32>
    %51 = arith.subf %47, %50 : vector<2x16xf32>
    %52 = arith.cmpf one, %51, %51 : vector<2x16xf32>
    %53 = vector.broadcast %cst_31 : f32 to vector<2x16xf32>
    %54 = arith.addf %47, %53 : vector<2x16xf32>
    %55 = math.absf %51 : vector<2x16xf32>
    %cst_32 = arith.constant 0.000000e+00 : f32
    %56 = vector.broadcast %cst_32 : f32 to vector<2x16xf32>
    %57 = arith.subf %56, %55 : vector<2x16xf32>
    %58 = math.exp %57 : vector<2x16xf32>
    %59 = math.log1p %58 : vector<2x16xf32>
    %60 = arith.addf %49, %59 : vector<2x16xf32>
    %61 = arith.select %52, %54, %60 : vector<2x16xi1>, vector<2x16xf32>
    %cst_33 = arith.constant 9.900000e-01 : f32
    %62 = vector.broadcast %cst_33 : f32 to vector<2x16xf32>
    %63 = arith.mulf %62, %61 : vector<2x16xf32>
    %cst_34 = arith.constant 0.00999999977 : f32
    %64 = vector.broadcast %cst_34 : f32 to vector<2x16xf32>
    %65 = arith.addf %64, %63 : vector<2x16xf32>
    %66 = tpu.iota {dimensions = array<i32: 0>} : vector<2x16xi32>
    %c0_i32 = arith.constant 0 : i32
    %67 = vector.broadcast %c0_i32 : i32 to vector<2x16xi32>
    %68 = arith.cmpi eq, %66, %67 : vector<2x16xi32>
    %69 = arith.select %68, %47, %65 : vector<2x16xi1>, vector<2x16xf32>
    %c0_35 = arith.constant 0 : index
    %c0_36 = arith.constant 0 : index
    %70 = vector.load %arg12[%c0_35, %c0_36] : memref<2x16xf32, #tpu.memory_space<vmem>>, vector<2x16xf32>
    tpu.vector_store %arg12[%c0_35, %c0_36], %69 {strides = array<i32>} : memref<2x16xf32, #tpu.memory_space<vmem>>, vector<2x16xf32>,
    return
  }
  func.func @transform_0(%arg0: i32) -> (i32, i32) {
    %c0_i32 = arith.constant 0 : i32
    %c0_i32_0 = arith.constant 0 : i32
    return %arg0, %c0_i32 : i32, i32
  }
  func.func @transform_1(%arg0: i32) -> (i32, i32) {
    %c0_i32 = arith.constant 0 : i32
    %c0_i32_0 = arith.constant 0 : i32
    return %arg0, %c0_i32 : i32, i32
  }
  func.func @transform_2(%arg0: i32) -> (i32, i32) {
    %c0_i32 = arith.constant 0 : i32
    %c0_i32_0 = arith.constant 0 : i32
    %c0_i32_1 = arith.constant 0 : i32
    return %c0_i32, %c0_i32_0 : i32, i32
  }
  func.func @transform_3(%arg0: i32) -> (i32, i32) {
    %c0_i32 = arith.constant 0 : i32
    %c0_i32_0 = arith.constant 0 : i32
    %c0_i32_1 = arith.constant 0 : i32
    return %c0_i32, %c0_i32_0 : i32, i32
  }
  func.func @transform_4(%arg0: i32) -> (i32, i32) {
    %c0_i32 = arith.constant 0 : i32
    %c0_i32_0 = arith.constant 0 : i32
    %c0_i32_1 = arith.constant 0 : i32
    return %c0_i32, %c0_i32_0 : i32, i32
  }
  func.func @transform_5(%arg0: i32) -> (i32, i32) {
    %c0_i32 = arith.constant 0 : i32
    %c0_i32_0 = arith.constant 0 : i32
    %c0_i32_1 = arith.constant 0 : i32
    return %c0_i32, %c0_i32_0 : i32, i32
  }
  func.func @transform_6(%arg0: i32) -> (i32, i32) {
    %c0_i32 = arith.constant 0 : i32
    %c0_i32_0 = arith.constant 0 : i32
    %c0_i32_1 = arith.constant 0 : i32
    return %c0_i32, %c0_i32_0 : i32, i32
  }
  func.func @transform_7(%arg0: i32) -> (i32, i32) {
    %c0_i32 = arith.constant 0 : i32
    %c0_i32_0 = arith.constant 0 : i32
    %c0_i32_1 = arith.constant 0 : i32
    return %c0_i32, %c0_i32_0 : i32, i32
  }
  func.func @transform_8(%arg0: i32) -> (i32, i32) {
    %c0_i32 = arith.constant 0 : i32
    %c0_i32_0 = arith.constant 0 : i32
    %c0_i32_1 = arith.constant 0 : i32
    return %c0_i32, %c0_i32_0 : i32, i32
  }
  func.func @transform_9(%arg0: i32) -> (i32, i32) {
    %c0_i32 = arith.constant 0 : i32
    %c0_i32_0 = arith.constant 0 : i32
    %c0_i32_1 = arith.constant 0 : i32
    return %c0_i32, %c0_i32_0 : i32, i32
  }
  func.func @transform_10(%arg0: i32) -> (i32, i32) {
    %c0_i32 = arith.constant 0 : i32
    %c0_i32_0 = arith.constant 0 : i32
    %c0_i32_1 = arith.constant 0 : i32
    return %c0_i32, %c0_i32_0 : i32, i32
  }
  func.func @transform_11(%arg0: i32) -> (i32, i32) {
    %c0_i32 = arith.constant 0 : i32
    %c0_i32_0 = arith.constant 0 : i32
    return %c0_i32, %arg0 : i32, i32
  }
}

</mosaic_0001>

<llo_original>
// kernel: tpu_custom_call.1
$region0: #{tpu_custom_call.1}
  #allocation0 [shape = 'u32[]', space=smem, size = 0x4, offset = 0x4, fixed_abs, tag = 'smem constant byte address 0x4 - core index']
  #allocation1 [shape = 'u32[144,128]{1,0:T(1,128)}', space=vmem, size = 0x12000, scoped, tag = 'internal scratch']
  %s0 = inlined_call_operand.vmem [shape: f32[16,64], index: 0, kind: input, shape index: {}]
  %s1 = inlined_call_operand.vmem [shape: f32[16,4], index: 1, kind: input, shape index: {}]
  %s2 = inlined_call_operand.hbm [shape: f32[64,128], index: 2, kind: input, shape index: {}]
  %s3 = inlined_call_operand.vmem [shape: f32[4,128], index: 3, kind: input, shape index: {}]
  %s4 = inlined_call_operand.vmem [shape: f32[1,128], index: 4, kind: input, shape index: {}]
  %s5 = inlined_call_operand.hbm [shape: f32[128,128], index: 5, kind: input, shape index: {}]
  %s6 = inlined_call_operand.vmem [shape: f32[1,128], index: 6, kind: input, shape index: {}]
  %s7 = inlined_call_operand.vmem [shape: f32[1,128], index: 7, kind: input, shape index: {}]
  %s8 = inlined_call_operand.vmem [shape: f32[1,128], index: 8, kind: input, shape index: {}]
  %s9 = inlined_call_operand.vmem [shape: f32[2,128], index: 9, kind: input, shape index: {}]
  %s10 = inlined_call_operand.vmem [shape: f32[2,1], index: 10, kind: input, shape index: {}]
  %s11 = inlined_call_operand.hbm [shape: f32[2,16], index: 11, kind: output, shape index: {}]
  %s12 = sld [smem:[#allocation0]]
  $region62: #{tpu_custom_call.1} parent=0
    _
  %s14 = ssub.s32 1, %s12
  %s15 = scalar_select 0, %s14, %s12
  $region1: #{tpu_custom_call.1} parent=0
    #allocation2 [shape = 'u8[32768]{0}', space=vmem, size = 0x8000, scoped, tag = 'input window, operand 2, single buffered']
    #allocation3 [shape = 's32[1]{0}', space=sflag, size = 0x4, scoped, tag = 'scoped memory for tpu_custom_call.1']
    #allocation4 [shape = 's32[1]{0}', space=sflag, size = 0x4, scoped, tag = 'scoped memory for tpu_custom_call.1']
    #allocation5 [shape = 'u8[65536]{0}', space=vmem, size = 0x10000, scoped, tag = 'input window, operand 5, single buffered']
    #allocation6 [shape = 's32[1]{0}', space=sflag, size = 0x4, scoped, tag = 'scoped memory for tpu_custom_call.1']
    #allocation7 [shape = 'u8[1024]{0}', space=vmem, size = 0x400, scoped, tag = 'output window, operand 0, single buffered']
    %16 = vsyncpa [#allocation3], 0
    %17 = vsyncpa [#allocation6], 0
    %18 = vsyncpa [#allocation4], 0
    // Predicated region
    $region2: #{tpu_custom_call.1} parent=1 // pred_check
      _
    $region3: #{tpu_custom_call.1} parent=1 // pred_check_branch
      %20 = sbr.rel (0) target = $region5
    $region4: #{tpu_custom_call.1} parent=1 // pred_region
      _
    $region5: #{tpu_custom_call.1} parent=1 // pred_fallthru
      _
    // Predicated region
    $region6: #{tpu_custom_call.1} parent=1 // pred_check
      _
    $region7: #{tpu_custom_call.1} parent=1 // pred_check_branch
      %22 = sbr.rel (0) target = $region9
    $region8: #{tpu_custom_call.1} parent=1 // pred_region
      _
    $region9: #{tpu_custom_call.1} parent=1 // pred_fallthru
      _
    // Predicated region
    $region10: #{tpu_custom_call.1} parent=1 // pred_check
      _
    $region11: #{tpu_custom_call.1} parent=1 // pred_check_branch
      %24 = sbr.rel (0) target = $region13
    $region12: #{tpu_custom_call.1} parent=1 // pred_region
      %s26 = ssub.s32 1024, 1024
      %27 = vsyncadd [#allocation3], %s26
      %s28 = sshll.u32 [#allocation2], 4
      %s29 = int_to_ptr.vmem [resolvable:$true] %s28
      %34 = dma.hbm_to_vmem [thread:$0]  %s2, 1024, %s29, [#allocation3], 128, 128, 8
    $region13: #{tpu_custom_call.1} parent=1 // pred_fallthru
      _
    // Predicated region
    $region14: #{tpu_custom_call.1} parent=1 // pred_check
      _
    $region15: #{tpu_custom_call.1} parent=1 // pred_check_branch
      %36 = sbr.rel (0) target = $region17
    $region16: #{tpu_custom_call.1} parent=1 // pred_region
      _
    $region17: #{tpu_custom_call.1} parent=1 // pred_fallthru
      _
    // Predicated region
    $region18: #{tpu_custom_call.1} parent=1 // pred_check
      _
    $region19: #{tpu_custom_call.1} parent=1 // pred_check_branch
      %38 = sbr.rel (0) target = $region21
    $region20: #{tpu_custom_call.1} parent=1 // pred_region
      _
    $region21: #{tpu_custom_call.1} parent=1 // pred_fallthru
      _
    // Predicated region
    $region22: #{tpu_custom_call.1} parent=1 // pred_check
      _
    $region23: #{tpu_custom_call.1} parent=1 // pred_check_branch
      %40 = sbr.rel (0) target = $region25
    $region24: #{tpu_custom_call.1} parent=1 // pred_region
      %s42 = ssub.s32 2048, 2048
      %43 = vsyncadd [#allocation6], %s42
      %s44 = sshll.u32 [#allocation5], 4
      %s45 = int_to_ptr.vmem [resolvable:$true] %s44
      %50 = dma.hbm_to_vmem [thread:$0]  %s5, 2048, %s45, [#allocation6], 128, 128, 8
    $region25: #{tpu_custom_call.1} parent=1 // pred_fallthru
      _
    // Predicated region
    $region26: #{tpu_custom_call.1} parent=1 // pred_check
      _
    $region27: #{tpu_custom_call.1} parent=1 // pred_check_branch
      %52 = sbr.rel (0) target = $region29
    $region28: #{tpu_custom_call.1} parent=1 // pred_region
      _
    $region29: #{tpu_custom_call.1} parent=1 // pred_fallthru
      _
    // Predicated region
    $region30: #{tpu_custom_call.1} parent=1 // pred_check
      _
    $region31: #{tpu_custom_call.1} parent=1 // pred_check_branch
      %54 = sbr.rel (0) target = $region33
    $region32: #{tpu_custom_call.1} parent=1 // pred_region
      _
    $region33: #{tpu_custom_call.1} parent=1 // pred_fallthru
      _
    // Predicated region
    $region34: #{tpu_custom_call.1} parent=1 // pred_check
      _
    $region35: #{tpu_custom_call.1} parent=1 // pred_check_branch
      %56 = sbr.rel (0) target = $region37
    $region36: #{tpu_custom_call.1} parent=1 // pred_region
      _
    $region37: #{tpu_custom_call.1} parent=1 // pred_fallthru
      _
    // Predicated region
    $region38: #{tpu_custom_call.1} parent=1 // pred_check
      _
    $region39: #{tpu_custom_call.1} parent=1 // pred_check_branch
      %58 = sbr.rel (0) target = $region41
    $region40: #{tpu_custom_call.1} parent=1 // pred_region
      _
    $region41: #{tpu_custom_call.1} parent=1 // pred_fallthru
      _
    // Predicated region
    $region42: #{tpu_custom_call.1} parent=1 // pred_check
      _
    $region43: #{tpu_custom_call.1} parent=1 // pred_check_branch
      %60 = sbr.rel (0) target = $region45
    $region44: #{tpu_custom_call.1} parent=1 // pred_region
      _
    $region45: #{tpu_custom_call.1} parent=1 // pred_fallthru
      _
    // Predicated region
    $region46: #{tpu_custom_call.1} parent=1 // pred_check
      _
    $region47: #{tpu_custom_call.1} parent=1 // pred_check_branch
      %62 = sbr.rel (0) target = $region49
    $region48: #{tpu_custom_call.1} parent=1 // pred_region
      %63 = dma.done [#allocation3], 1024
    $region49: #{tpu_custom_call.1} parent=1 // pred_fallthru
      _
    // Predicated region
    $region50: #{tpu_custom_call.1} parent=1 // pred_check
      _
    $region51: #{tpu_custom_call.1} parent=1 // pred_check_branch
      %65 = sbr.rel (0) target = $region53
    $region52: #{tpu_custom_call.1} parent=1 // pred_region
      %66 = dma.done [#allocation6], 2048
    $region53: #{tpu_custom_call.1} parent=1 // pred_fallthru
      _
    %v67 = vld [vmem:[%s0] sm:$0xff]
    %v68 = vld [vmem:[%s0 + $0x8] sm:$0xff]
    %v69 = vld [vmem:[%s1] sm:$0xff]
    %v70 = vld [vmem:[%s1 + $0x8] sm:$0xff]
    %v71 = vld [vmem:[#allocation2] sm:$0xff]
    %v72 = vld [vmem:[#allocation2 + $0x8] sm:$0xff]
    %v73 = vld [vmem:[#allocation2 + $0x10] sm:$0xff]
    %v74 = vld [vmem:[#allocation2 + $0x18] sm:$0xff]
    %v75 = vld [vmem:[#allocation2 + $0x20] sm:$0xff]
    %v76 = vld [vmem:[#allocation2 + $0x28] sm:$0xff]
    %v77 = vld [vmem:[#allocation2 + $0x30] sm:$0xff]
    %v78 = vld [vmem:[#allocation2 + $0x38] sm:$0xff]
    %v79 = vld [vmem:[%s3] sm:$0xf]
    %vm80 = vcmask 31744
    %v82 = vsel %vm80, %v69, 0
    %v85 = vsel %vm80, %v70, 0
    %vm87 = vcmask 1043456
    %v89 = vsel %vm87, %v79, 0
    %91 = vmatprep.subr.mxu0 0.0
    %92 = vmatpush1.msra.mxu0 0.0
    %93 = vmatprep.subr.mxu0 0.0
    %94 = vmatpush1.msra.mxu0 0.0
    %95 = vmatprep.subr.mxu0 0.0
    %96 = vmatpush1.msra.mxu0 0.0
    %97 = vmatprep.subr.mxu0 0.0
    %98 = vmatpush1.msra.mxu0 0.0
    %99 = vmatprep.subr.mxu0 0.0
    %100 = vmatpush1.msra.mxu0 0.0
    %101 = vmatprep.subr.mxu0 0.0
    %102 = vmatpush1.msra.mxu0 0.0
    %103 = vmatprep.subr.mxu0 0.0
    %104 = vmatpush1.msra.mxu0 0.0
    %105 = vmatprep.subr.mxu0 0.0
    %106 = vmatpush1.msra.mxu0 0.0
    %107 = vmatprep.subr.mxu0 0.0
    %108 = vmatpush1.msra.mxu0 0.0
    %109 = vmatprep.subr.mxu0 0.0
    %110 = vmatpush1.msra.mxu0 0.0
    %111 = vmatprep.subr.mxu0 0.0
    %112 = vmatpush1.msra.mxu0 0.0
    %113 = vmatprep.subr.mxu0 0.0
    %114 = vmatpush1.msra.mxu0 0.0
    %115 = vmatprep.subr.mxu0 0.0
    %116 = vmatpush1.msra.mxu0 0.0
    %117 = vmatprep.subr.mxu0 0.0
    %118 = vmatpush1.msra.mxu0 0.0
    %119 = vmatprep.subr.mxu0 0.0
    %120 = vmatpush1.msra.mxu0 0.0
    %121 = vmatprep.subr.mxu0 0.0
    %122 = vmatpush1.msra.mxu0 %v89
    %123 = vmatprep.subr.mxu0 0.0
    %124 = vmatpush2.msra.mxu0 0.0
    %125 = vmatprep.subr.mxu0 0.0
    %126 = vmatpush2.msra.mxu0 0.0
    %127 = vmatprep.subr.mxu0 0.0
    %128 = vmatpush2.msra.mxu0 0.0
    %129 = vmatprep.subr.mxu0 0.0
    %130 = vmatpush2.msra.mxu0 0.0
    %131 = vmatprep.subr.mxu0 0.0
    %132 = vmatpush2.msra.mxu0 0.0
    %133 = vmatprep.subr.mxu0 0.0
    %134 = vmatpush2.msra.mxu0 0.0
    %135 = vmatprep.subr.mxu0 0.0
    %136 = vmatpush2.msra.mxu0 0.0
    %137 = vmatprep.subr.mxu0 0.0
    %138 = vmatpush2.msra.mxu0 0.0
    %139 = vmatprep.subr.mxu0 0.0
    %140 = vmatpush2.msra.mxu0 0.0
    %141 = vmatprep.subr.mxu0 0.0
    %142 = vmatpush2.msra.mxu0 0.0
    %143 = vmatprep.subr.mxu0 0.0
    %144 = vmatpush2.msra.mxu0 0.0
    %145 = vmatprep.subr.mxu0 0.0
    %146 = vmatpush2.msra.mxu0 0.0
    %147 = vmatprep.subr.mxu0 0.0
    %148 = vmatpush2.msra.mxu0 0.0
    %149 = vmatprep.subr.mxu0 0.0
    %150 = vmatpush2.msra.mxu0 0.0
    %151 = vmatprep.subr.mxu0 0.0
    %152 = vmatpush2.msra.mxu0 0.0
    %153 = vmatprep.subr.mxu0 0.0
    %154 = vmatpush2.msra.mxu0 0.0
    %155 = vmatprep.mubr.f32.mxu0 0.0
    %156 = vmatmul.mubr.f32.gmra.mxu0 %v82
    %v157 = vpop.f32.mrf.mxu0
    %v158 = vadd.f32 0.0, %v157
    %v159 = vpop.f32.mrf.mxu0
    %160 = vmatprep.mubr.f32.mxu0 0.0
    %161 = vmatmul.mubr.f32.gmra.mxu0 %v85
    %v162 = vpop.f32.mrf.mxu0
    %v163 = vadd.f32 0.0, %v162
    %v164 = vpop.f32.mrf.mxu0
    %165 = vdwg.mxu0
    %vm166 = vcmask 523264
    %v168 = vsel %vm166, %v67, 0
    %v171 = vsel %vm166, %v68, 0
    %173 = vmatprep.subr.mxu0 0.0
    %174 = vmatpush1.msra.mxu0 0.0
    %175 = vmatprep.subr.mxu0 0.0
    %176 = vmatpush1.msra.mxu0 0.0
    %177 = vmatprep.subr.mxu0 0.0
    %178 = vmatpush1.msra.mxu0 0.0
    %179 = vmatprep.subr.mxu0 0.0
    %180 = vmatpush1.msra.mxu0 0.0
    %181 = vmatprep.subr.mxu0 0.0
    %182 = vmatpush1.msra.mxu0 0.0
    %183 = vmatprep.subr.mxu0 0.0
    %184 = vmatpush1.msra.mxu0 0.0
    %185 = vmatprep.subr.mxu0 0.0
    %186 = vmatpush1.msra.mxu0 0.0
    %187 = vmatprep.subr.mxu0 0.0
    %188 = vmatpush1.msra.mxu0 0.0
    %189 = vmatprep.subr.mxu0 0.0
    %190 = vmatpush1.msra.mxu0 %v78
    %191 = vmatprep.subr.mxu0 0.0
    %192 = vmatpush1.msra.mxu0 %v77
    %193 = vmatprep.subr.mxu0 0.0
    %194 = vmatpush1.msra.mxu0 %v76
    %195 = vmatprep.subr.mxu0 0.0
    %196 = vmatpush1.msra.mxu0 %v75
    %197 = vmatprep.subr.mxu0 0.0
    %198 = vmatpush1.msra.mxu0 %v74
    %199 = vmatprep.subr.mxu0 0.0
    %200 = vmatpush1.msra.mxu0 %v73
    %201 = vmatprep.subr.mxu0 0.0
    %202 = vmatpush1.msra.mxu0 %v72
    %203 = vmatprep.subr.mxu0 0.0
    %204 = vmatpush1.msra.mxu0 %v71
    %205 = vmatprep.subr.mxu0 0.0
    %206 = vmatpush2.msra.mxu0 0.0
    %207 = vmatprep.subr.mxu0 0.0
    %208 = vmatpush2.msra.mxu0 0.0
    %209 = vmatprep.subr.mxu0 0.0
    %210 = vmatpush2.msra.mxu0 0.0
    %211 = vmatprep.subr.mxu0 0.0
    %212 = vmatpush2.msra.mxu0 0.0
    %213 = vmatprep.subr.mxu0 0.0
    %214 = vmatpush2.msra.mxu0 0.0
    %215 = vmatprep.subr.mxu0 0.0
    %216 = vmatpush2.msra.mxu0 0.0
    %217 = vmatprep.subr.mxu0 0.0
    %218 = vmatpush2.msra.mxu0 0.0
    %219 = vmatprep.subr.mxu0 0.0
    %220 = vmatpush2.msra.mxu0 0.0
    %221 = vmatprep.subr.mxu0 0.0
    %222 = vmatpush2.msra.mxu0 0.0
    %223 = vmatprep.subr.mxu0 0.0
    %224 = vmatpush2.msra.mxu0 0.0
    %225 = vmatprep.subr.mxu0 0.0
    %226 = vmatpush2.msra.mxu0 0.0
    %227 = vmatprep.subr.mxu0 0.0
    %228 = vmatpush2.msra.mxu0 0.0
    %229 = vmatprep.subr.mxu0 0.0
    %230 = vmatpush2.msra.mxu0 0.0
    %231 = vmatprep.subr.mxu0 0.0
    %232 = vmatpush2.msra.mxu0 0.0
    %233 = vmatprep.subr.mxu0 0.0
    %234 = vmatpush2.msra.mxu0 0.0
    %235 = vmatprep.subr.mxu0 0.0
    %236 = vmatpush2.msra.mxu0 0.0
    %237 = vmatprep.mubr.f32.mxu0 0.0
    %238 = vmatmul.mubr.f32.gmra.mxu0 %v168
    %v239 = vpop.f32.mrf.mxu0
    %v240 = vadd.f32 %v158, %v239
    %v241 = vpop.f32.mrf.mxu0
    %242 = vmatprep.mubr.f32.mxu0 0.0
    %243 = vmatmul.mubr.f32.gmra.mxu0 %v171
    %v244 = vpop.f32.mrf.mxu0
    %v245 = vadd.f32 %v163, %v244
    %v246 = vpop.f32.mrf.mxu0
    %247 = vdwg.mxu0
    %v248 = vld [vmem:[%s4] sm:$0x1]
    %v250 = vlaneseq
    %v251 = vshrl.u32 %v250, 7
    %v252 = vsub.s32 0, %v251
    %v253 = vrot.slane %v248, %v252
    %v255 = vadd.f32 %v240, %v253
    %v256 = vadd.f32 %v245, %v253
    %v257 = vmax.f32 %v255, 0.0
    %v258 = vmax.f32 %v256, 0.0
    %v259 = vld [vmem:[#allocation5] sm:$0xff]
    %v260 = vld [vmem:[#allocation5 + $0x8] sm:$0xff]
    %v261 = vld [vmem:[#allocation5 + $0x10] sm:$0xff]
    %v262 = vld [vmem:[#allocation5 + $0x18] sm:$0xff]
    %v263 = vld [vmem:[#allocation5 + $0x20] sm:$0xff]
    %v264 = vld [vmem:[#allocation5 + $0x28] sm:$0xff]
    %v265 = vld [vmem:[#allocation5 + $0x30] sm:$0xff]
    %v266 = vld [vmem:[#allocation5 + $0x38] sm:$0xff]
    %v267 = vld [vmem:[#allocation5 + $0x40] sm:$0xff]
    %v268 = vld [vmem:[#allocation5 + $0x48] sm:$0xff]
    %v269 = vld [vmem:[#allocation5 + $0x50] sm:$0xff]
    %v270 = vld [vmem:[#allocation5 + $0x58] sm:$0xff]
    %v271 = vld [vmem:[#allocation5 + $0x60] sm:$0xff]
    %v272 = vld [vmem:[#allocation5 + $0x68] sm:$0xff]
    %v273 = vld [vmem:[#allocation5 + $0x70] sm:$0xff]
    %v274 = vld [vmem:[#allocation5 + $0x78] sm:$0xff]
    %v275 = vld [vmem:[%s6] sm:$0x1]
    %v277 = vlaneseq
    %v278 = vshrl.u32 %v277, 7
    %v279 = vsub.s32 0, %v278
    %v280 = vrot.slane %v275, %v279
    %282 = vmatprep.subr.mxu0 0.0
    %283 = vmatpush1.msra.mxu0 %v274
    %284 = vmatprep.subr.mxu0 0.0
    %285 = vmatpush1.msra.mxu0 %v273
    %286 = vmatprep.subr.mxu0 0.0
    %287 = vmatpush1.msra.mxu0 %v272
    %288 = vmatprep.subr.mxu0 0.0
    %289 = vmatpush1.msra.mxu0 %v271
    %290 = vmatprep.subr.mxu0 0.0
    %291 = vmatpush1.msra.mxu0 %v270
    %292 = vmatprep.subr.mxu0 0.0
    %293 = vmatpush1.msra.mxu0 %v269
    %294 = vmatprep.subr.mxu0 0.0
    %295 = vmatpush1.msra.mxu0 %v268
    %296 = vmatprep.subr.mxu0 0.0
    %297 = vmatpush1.msra.mxu0 %v267
    %298 = vmatprep.subr.mxu0 0.0
    %299 = vmatpush1.msra.mxu0 %v266
    %300 = vmatprep.subr.mxu0 0.0
    %301 = vmatpush1.msra.mxu0 %v265
    %302 = vmatprep.subr.mxu0 0.0
    %303 = vmatpush1.msra.mxu0 %v264
    %304 = vmatprep.subr.mxu0 0.0
    %305 = vmatpush1.msra.mxu0 %v263
    %306 = vmatprep.subr.mxu0 0.0
    %307 = vmatpush1.msra.mxu0 %v262
    %308 = vmatprep.subr.mxu0 0.0
    %309 = vmatpush1.msra.mxu0 %v261
    %310 = vmatprep.subr.mxu0 0.0
    %311 = vmatpush1.msra.mxu0 %v260
    %312 = vmatprep.subr.mxu0 0.0
    %313 = vmatpush1.msra.mxu0 %v259
    %314 = vmatprep.subr.mxu0 0.0
    %315 = vmatpush2.msra.mxu0 0.0
    %316 = vmatprep.subr.mxu0 0.0
    %317 = vmatpush2.msra.mxu0 0.0
    %318 = vmatprep.subr.mxu0 0.0
    %319 = vmatpush2.msra.mxu0 0.0
    %320 = vmatprep.subr.mxu0 0.0
    %321 = vmatpush2.msra.mxu0 0.0
    %322 = vmatprep.subr.mxu0 0.0
    %323 = vmatpush2.msra.mxu0 0.0
    %324 = vmatprep.subr.mxu0 0.0
    %325 = vmatpush2.msra.mxu0 0.0
    %326 = vmatprep.subr.mxu0 0.0
    %327 = vmatpush2.msra.mxu0 0.0
    %328 = vmatprep.subr.mxu0 0.0
    %329 = vmatpush2.msra.mxu0 0.0
    %330 = vmatprep.subr.mxu0 0.0
    %331 = vmatpush2.msra.mxu0 0.0
    %332 = vmatprep.subr.mxu0 0.0
    %333 = vmatpush2.msra.mxu0 0.0
    %334 = vmatprep.subr.mxu0 0.0
    %335 = vmatpush2.msra.mxu0 0.0
    %336 = vmatprep.subr.mxu0 0.0
    %337 = vmatpush2.msra.mxu0 0.0
    %338 = vmatprep.subr.mxu0 0.0
    %339 = vmatpush2.msra.mxu0 0.0
    %340 = vmatprep.subr.mxu0 0.0
    %341 = vmatpush2.msra.mxu0 0.0
    %342 = vmatprep.subr.mxu0 0.0
    %343 = vmatpush2.msra.mxu0 0.0
    %344 = vmatprep.subr.mxu0 0.0
    %345 = vmatpush2.msra.mxu0 0.0
    %346 = vmatprep.mubr.f32.mxu0 0.0
    %347 = vmatmul.mubr.f32.gmra.mxu0 %v257
    %v348 = vpop.f32.mrf.mxu0
    %v349 = vadd.f32 %v280, %v348
    %v350 = vpop.f32.mrf.mxu0
    %351 = vmatprep.mubr.f32.mxu0 0.0
    %352 = vmatmul.mubr.f32.gmra.mxu0 %v258
    %v353 = vpop.f32.mrf.mxu0
    %v354 = vadd.f32 %v280, %v353
    %v355 = vpop.f32.mrf.mxu0
    %356 = vdwg.mxu0
    %357 = vadd.xlane.f32.xlu0 %v349
    %v358 = vpop.xlane.xlu0 %357
    %359 = vadd.xlane.f32.xlu0 %v354
    %v360 = vpop.xlane.xlu0 %359
    %v361 = vmul.f32 %v358, 0.014705882
    %v362 = vmul.f32 %v360, 0.014705882
    %v363 = vmul.f32 %v349, %v349
    %v364 = vmul.f32 %v354, %v354
    %365 = vadd.xlane.f32.xlu0 %v363
    %v366 = vpop.xlane.xlu0 %365
    %367 = vadd.xlane.f32.xlu0 %v364
    %v368 = vpop.xlane.xlu0 %367
    %v369 = vmul.f32 %v366, 0.014705882
    %v370 = vmul.f32 %v368, 0.014705882
    %v371 = vmul.f32 %v361, %v361
    %v372 = vmul.f32 %v362, %v362
    %v373 = vsub.f32 %v369, %v371
    %v374 = vsub.f32 %v370, %v372
    %v375 = vsub.f32 %v349, %v361
    %v376 = vsub.f32 %v354, %v362
    %v377 = vadd.f32 %v373, 1e-05
    %v378 = vadd.f32 %v374, 1e-05
    %v379 = vrsqrt.pop %v377
    %v380 = vrsqrt.pop %v378
    %v381 = vmul.f32 %v375, %v379
    %v382 = vmul.f32 %v376, %v380
    %v383 = vld [vmem:[%s7] sm:$0x1]
    %v385 = vlaneseq
    %v386 = vshrl.u32 %v385, 7
    %v387 = vsub.s32 0, %v386
    %v388 = vrot.slane %v383, %v387
    %v390 = vmul.f32 %v381, %v388
    %v391 = vmul.f32 %v382, %v388
    %v392 = vld [vmem:[%s8] sm:$0x1]
    %v394 = vlaneseq
    %v395 = vshrl.u32 %v394, 7
    %v396 = vsub.s32 0, %v395
    %v397 = vrot.slane %v392, %v396
    %v399 = vadd.f32 %v390, %v397
    %v400 = vadd.f32 %v391, %v397
    %v401 = vmax.f32 %v399, 0.0
    %v402 = vmax.f32 %v400, 0.0
    %v403 = vld [vmem:[%s9] sm:$0x3]
    %v404 = vld [vmem:[%s10] sm:$0x3]
    %406 = vset.pattern.permute.xlu0 0
    %407 = vperm.xlu0 %406, %v404
    %v408 = vpop.permute.xlu0 %407
    %410 = vmatprep.subr.mxu0 0.0
    %411 = vmatpush1.xpose.msra.mxu0 0.0
    %412 = vmatprep.subr.mxu0 0.0
    %413 = vmatpush1.xpose.msra.mxu0 0.0
    %414 = vmatprep.subr.mxu0 0.0
    %415 = vmatpush1.xpose.msra.mxu0 0.0
    %416 = vmatprep.subr.mxu0 0.0
    %417 = vmatpush1.xpose.msra.mxu0 0.0
    %418 = vmatprep.subr.mxu0 0.0
    %419 = vmatpush1.xpose.msra.mxu0 0.0
    %420 = vmatprep.subr.mxu0 0.0
    %421 = vmatpush1.xpose.msra.mxu0 0.0
    %422 = vmatprep.subr.mxu0 0.0
    %423 = vmatpush1.xpose.msra.mxu0 0.0
    %424 = vmatprep.subr.mxu0 0.0
    %425 = vmatpush1.xpose.msra.mxu0 0.0
    %426 = vmatprep.subr.mxu0 0.0
    %427 = vmatpush1.xpose.msra.mxu0 0.0
    %428 = vmatprep.subr.mxu0 0.0
    %429 = vmatpush1.xpose.msra.mxu0 0.0
    %430 = vmatprep.subr.mxu0 0.0
    %431 = vmatpush1.xpose.msra.mxu0 0.0
    %432 = vmatprep.subr.mxu0 0.0
    %433 = vmatpush1.xpose.msra.mxu0 0.0
    %434 = vmatprep.subr.mxu0 0.0
    %435 = vmatpush1.xpose.msra.mxu0 0.0
    %436 = vmatprep.subr.mxu0 0.0
    %437 = vmatpush1.xpose.msra.mxu0 0.0
    %438 = vmatprep.subr.mxu0 0.0
    %439 = vmatpush1.xpose.msra.mxu0 %v402
    %440 = vmatprep.subr.mxu0 0.0
    %441 = vmatpush1.xpose.msra.mxu0 %v401
    %442 = vmatprep.subr.mxu0 0.0
    %443 = vmatpush2.xpose.msra.mxu0 0.0
    %444 = vmatprep.subr.mxu0 0.0
    %445 = vmatpush2.xpose.msra.mxu0 0.0
    %446 = vmatprep.subr.mxu0 0.0
    %447 = vmatpush2.xpose.msra.mxu0 0.0
    %448 = vmatprep.subr.mxu0 0.0
    %449 = vmatpush2.xpose.msra.mxu0 0.0
    %450 = vmatprep.subr.mxu0 0.0
    %451 = vmatpush2.xpose.msra.mxu0 0.0
    %452 = vmatprep.subr.mxu0 0.0
    %453 = vmatpush2.xpose.msra.mxu0 0.0
    %454 = vmatprep.subr.mxu0 0.0
    %455 = vmatpush2.xpose.msra.mxu0 0.0
    %456 = vmatprep.subr.mxu0 0.0
    %457 = vmatpush2.xpose.msra.mxu0 0.0
    %458 = vmatprep.subr.mxu0 0.0
    %459 = vmatpush2.xpose.msra.mxu0 0.0
    %460 = vmatprep.subr.mxu0 0.0
    %461 = vmatpush2.xpose.msra.mxu0 0.0
    %462 = vmatprep.subr.mxu0 0.0
    %463 = vmatpush2.xpose.msra.mxu0 0.0
    %464 = vmatprep.subr.mxu0 0.0
    %465 = vmatpush2.xpose.msra.mxu0 0.0
    %466 = vmatprep.subr.mxu0 0.0
    %467 = vmatpush2.xpose.msra.mxu0 0.0
    %468 = vmatprep.subr.mxu0 0.0
    %469 = vmatpush2.xpose.msra.mxu0 0.0
    %470 = vmatprep.subr.mxu0 0.0
    %471 = vmatpush2.xpose.msra.mxu0 0.0
    %472 = vmatprep.subr.mxu0 0.0
    %473 = vmatpush2.xpose.msra.mxu0 0.0
    %474 = vmatprep.mubr.f32.mxu0 0.0
    %475 = vmatmul.mubr.f32.gmra.mxu0 %v403
    %v476 = vpop.f32.mrf.mxu0
    %v477 = vadd.f32 %v408, %v476
    %v478 = vpop.f32.mrf.mxu0
    %479 = vdwg.mxu0
    %v480 = vmax.f32 %v477, 0.0
    %vm481 = vcmp.ne.f32.partialorder %v477, %v477
    %v482 = vadd.f32 %v477, 0.0
    %v483 = vand.u32 2147483647, %v477
    %v484 = vsub.f32 0.0, %v483
    %v485 = vmul.f32 %v484, 1.442695
    %v486 = vpow.pop %v485
    %v487 = vadd.f32 %v486, 1.0
    %v488 = vlog2.pop %v487
    %v489 = vmul.f32 %v488, 0.6931472
    %v490 = vmul.f32 -0.5, %v486
    %v491 = vadd.f32 %v490, 1.0
    %v492 = vmul.f32 %v491, %v486
    %v493 = vand.u32 2147483647, %v486
    %vm494 = vcmp.lt.f32.partialorder %v493, 0.0004427343
    %v495 = vsel %vm494, %v492, %v489
    %v496 = vadd.f32 %v480, %v495
    %v497 = vsel %vm481, %v482, %v496
    %v498 = vmul.f32 %v497, 0.99
    %v499 = vadd.f32 %v498, 0.01
    %v500 = vlaneseq
    %v501 = vshrl.u32 %v500, 7
    %vm502 = vcmp.eq.s32.totalorder %v501, 0
    %v503 = vsel %vm502, %v477, %v499
    %vm504 = vcmask 123904
    %505 = vst.msk [vmem:[#allocation7] sm:$0x3] %vm504, %v503
    // Predicated region
    $region54: #{tpu_custom_call.1} parent=1 // pred_check
      _
    $region55: #{tpu_custom_call.1} parent=1 // pred_check_branch
      %507 = sbr.rel (0) target = $region57
    $region56: #{tpu_custom_call.1} parent=1 // pred_region
      %s509 = ssub.s32 32, 32
      %510 = vsyncadd [#allocation4], %s509
      %s512 = sshll.u32 [#allocation7], 4
      %s513 = int_to_ptr.vmem [resolvable:$true] %s512
      %515 = dma.vmem_to_hbm [thread:$0]  %s513, 32, %s11, [#allocation4]
    $region57: #{tpu_custom_call.1} parent=1 // pred_fallthru
      _
    // Predicated region
    $region58: #{tpu_custom_call.1} parent=1 // pred_check
      _
    $region59: #{tpu_custom_call.1} parent=1 // pred_check_branch
      %517 = sbr.rel (0) target = $region61
    $region60: #{tpu_custom_call.1} parent=1 // pred_region
      %518 = dma.done [#allocation4], 32
    $region61: #{tpu_custom_call.1} parent=1 // pred_fallthru
      _
    %519 = vsyncpa [#allocation3], 1
    %520 = vsyncpa [#allocation6], 1
    %521 = vsyncpa [#allocation4], 1

</llo_original>
